<compile_context>
chip_gen: v5e
topology: v5e:2x2
jax: 0.10.0
libtpu: 0.0.40
codegen_flags: <defaults>
</compile_context>

<pallas_src>
import jax
import jax.numpy as jnp
from jax import lax
from jax.experimental import pallas as pl
from jax.experimental.pallas import tpu as pltpu

EPS = 1e-5  # PyTorch LayerNorm default


def addchannel_kernel(x_ref, w_ref, g_ref, beta_ref, s_ref, st_ref, o_ref):
    # x_ref:    (Nb, C_in, HW)   input block (HW lane-dense)
    # w_ref:    (C_out, C_in)    1x1 conv weight
    # g_ref:    (1, HW)          layernorm gamma, tiled H times along HW
    # beta_ref: (1, HW)          layernorm beta,  tiled H times along HW
    # s_ref:    (HW, H)          group-mean matrix S[k, h] = (k // W == h) / W
    # st_ref:   (H, HW)          broadcast-back matrix (S != 0 pattern, unscaled)
    # o_ref:    (Nb, C_out, HW)  output block
    nb = x_ref.shape[0]

    # Hoist all block-invariant loads out of the per-sample loop.
    w = w_ref[...]                               # stored dtype -> native MXU path
    gamma = g_ref[...].astype(jnp.float32)
    beta = beta_ref[...].astype(jnp.float32)
    S = s_ref[...]                               # already scaled by 1/W
    ST = st_ref[...]

    def body(i, carry):
        x = x_ref[i]                                                    # (C_in, HW)
        # 1x1 conv (bias intentionally omitted: LayerNorm over W cancels it exactly).
        # K=C_in is tiny, but HW keeps the MXU N dimension full; the kernel is
        # HBM-bound so the degenerate-K matmul cost is hidden.
        y = jnp.dot(w, x, preferred_element_type=jnp.float32)           # (C_out, HW) f32

        # Per-(c, h) group statistics over W, computed lane-dense on the MXU.
        mean = jnp.dot(y, S, preferred_element_type=jnp.float32)        # (C_out, H)
        ex2 = jnp.dot(y * y, S, preferred_element_type=jnp.float32)     # (C_out, H)
        var = jnp.maximum(ex2 - mean * mean, 0.0)
        rstd = lax.rsqrt(var + EPS)

        # Broadcast per-group stats back to (C_out, HW) via S^T pattern (still MXU).
        mean_b = jnp.dot(mean, ST, preferred_element_type=jnp.float32)
        rstd_b = jnp.dot(rstd, ST, preferred_element_type=jnp.float32)

        out = (y - mean_b) * rstd_b * gamma + beta
        o_ref[i] = out.astype(o_ref.dtype)
        return carry

    lax.fori_loop(0, nb, body, 0, unroll=nb <= 4)


def _choose_nb(n, c_in, c_out, hw, itemsize):
    """Samples per grid step: large enough to amortize per-step pipeline overhead,
    small enough that double-buffered blocks fit v7x's smaller VMEM, and keeping
    >= 2 parallel grid steps (two TensorCores on v7x) whenever possible."""
    per_sample = (c_in + c_out) * hw * itemsize          # input + output bytes / sample
    target = 4 * 1024 * 1024                             # ~4 MiB of in+out per block
    nb = max(1, min(n, target // max(per_sample, 1)))
    while nb > 1 and n // nb < 2:                        # keep >= 2 grid steps
        nb -= 1
    while n % nb != 0:                                   # clean tiling
        nb -= 1
    return nb


@jax.jit
def add_channel(x, conv_w, conv_b, ln_g, ln_b):
    """x: (N, C_in, H, W); conv_w: (C_out, C_in); conv_b: (C_out,);
    ln_g, ln_b: (W,). Returns (N, C_out, H, W)."""
    N, C_in, H, W = x.shape
    C_out = conv_w.shape[0]
    HW = H * W

    # Free metadata reshape (contiguous NCHW) -> lane-dense kernel blocks.
    x_flat = x.reshape(N, C_in, HW)

    # Layernorm affine params tiled once to (1, HW): position k <-> w index k % W.
    g_t = jnp.tile(ln_g, H).reshape(1, HW)
    beta_t = jnp.tile(ln_b, H).reshape(1, HW)

    # Constant group matrices for the segmented (per-W-group) LayerNorm reduce:
    # S pre-scaled by 1/W so the kernel's stats matmul directly yields means;
    # ST is the unscaled broadcast-back pattern (so no extra in-kernel scaling).
    grp = jnp.arange(HW, dtype=jnp.int32) // W
    onehot = (grp[:, None] == jnp.arange(H, dtype=jnp.int32)[None, :]).astype(jnp.float32)
    S = onehot / jnp.float32(W)        # (HW, H)
    ST = onehot.T                      # (H, HW)

    # NOTE: conv_b is accepted for API parity with nn.Conv2d but never enters the
    # kernel: LayerNorm over W removes any per-(n, c, h)-row constant offset.
    del conv_b

    Nb = _choose_nb(N, C_in, C_out, HW, jnp.dtype(x.dtype).itemsize)
    grid = (N // Nb,)

    out_flat = pl.pallas_call(
        addchannel_kernel,
        out_shape=jax.ShapeDtypeStruct((N, C_out, HW), x.dtype),
        grid_spec=pltpu.PrefetchScalarGridSpec(
            num_scalar_prefetch=0,
            grid=grid,
            in_specs=[
                pl.BlockSpec((Nb, C_in, HW), lambda n: (n, 0, 0)),
                pl.BlockSpec((C_out, C_in), lambda n: (0, 0)),
                pl.BlockSpec((1, HW), lambda n: (0, 0)),
                pl.BlockSpec((1, HW), lambda n: (0, 0)),
                pl.BlockSpec((HW, H), lambda n: (0, 0)),
                pl.BlockSpec((H, HW), lambda n: (0, 0)),
            ],
            out_specs=pl.BlockSpec((Nb, C_out, HW), lambda n: (n, 0, 0)),
        ),
        compiler_params=pltpu.CompilerParams(
            # One "parallel" batch axis (shards across v7x's two TensorCores).
            dimension_semantics=("parallel",),
            # Raise v5e's 16 MiB scoped-VMEM default; matches the v6e/v7x default, and
            # Nb is chosen so double-buffered blocks stay far below this limit.
            vmem_limit_bytes=32 * 1024 * 1024,
        ),
    )(x_flat, conv_w, g_t, beta_t, S, ST)

    return out_flat.reshape(N, C_out, H, W)


def add_channel_ref(x, conv_w, conv_b, ln_g, ln_b):
    """Pure-JAX reference for correctness check (keeps the conv bias explicitly)."""
    y = jnp.einsum("oc,nchw->nohw", conv_w, x) + conv_b[None, :, None, None]
    mean = jnp.mean(y, axis=-1, keepdims=True)
    var = jnp.mean((y - mean) ** 2, axis=-1, keepdims=True)
    yn = (y - mean) / jnp.sqrt(var + EPS)
    return yn * ln_g + ln_b


if __name__ == "__main__":
    key = jax.random.PRNGKey(0)
    N, C_in, C_out, H, W = 2, 4, 8, 16, 16  # LayerNorm(out_feature) with out_feature == W

    k1, k2, k3, k4, k5 = jax.random.split(key, 5)
    x = jax.random.normal(k1, (N, C_in, H, W), dtype=jnp.float32)
    # nn.Conv2d(in_c, out_c, kernel_size=1): weight (out_c, in_c, 1, 1) stored as (out_c, in_c)
    conv_w = jax.random.normal(k2, (C_out, C_in), dtype=jnp.float32) * 0.1
    conv_b = jax.random.normal(k3, (C_out,), dtype=jnp.float32) * 0.1
    # LayerNorm(out_feature) affine params (W,) — perturbed from (1, 0) to exercise the path.
    ln_g = 1.0 + 0.1 * jax.random.normal(k4, (W,), dtype=jnp.float32)
    ln_b = 0.1 * jax.random.normal(k5, (W,), dtype=jnp.float32)

    out = add_channel(x, conv_w, conv_b, ln_g, ln_b)
    out = jax.block_until_ready(out)

    ref = add_channel_ref(x, conv_w, conv_b, ln_g, ln_b)
    assert out.shape == (N, C_out, H, W)
    assert jnp.allclose(out, ref, atol=1e-4, rtol=1e-4), "mismatch vs reference"

    print("KERNEL_OK")
</pallas_src>

<mosaic_0001>
module attributes {stable_mosaic.version = 11 : i64} {
  func.func @addchannel_kernel(%arg0: i32, %arg1: memref<1x4x256xf32, #tpu.memory_space<vmem>>, %arg2: memref<8x4xf32, #tpu.memory_space<vmem>>, %arg3: memref<1x256xf32, #tpu.memory_space<vmem>>, %arg4: memref<1x256xf32, #tpu.memory_space<vmem>>, %arg5: memref<256x16xf32, #tpu.memory_space<vmem>>, %arg6: memref<16x256xf32, #tpu.memory_space<vmem>>, %arg7: memref<1x8x256xf32, #tpu.memory_space<vmem>>) attributes {dimension_semantics = [#tpu.dimension_semantics<parallel>], iteration_bounds = array<i64: 2>, scalar_prefetch = 0 : i64, scratch_operands = 0 : i64, tpu.core_type = #tpu.core_type<tc>, window_params = [{transform_indices = @transform_0, window_bounds = array<i64: 1, 4, 256>}, {pipeline_mode = #tpu.pipeline_mode<synchronous>, transform_indices = @transform_1, window_bounds = array<i64: 8, 4>}, {pipeline_mode = #tpu.pipeline_mode<synchronous>, transform_indices = @transform_2, window_bounds = array<i64: 1, 256>}, {pipeline_mode = #tpu.pipeline_mode<synchronous>, transform_indices = @transform_3, window_bounds = array<i64: 1, 256>}, {pipeline_mode = #tpu.pipeline_mode<synchronous>, transform_indices = @transform_4, window_bounds = array<i64: 256, 16>}, {pipeline_mode = #tpu.pipeline_mode<synchronous>, transform_indices = @transform_5, window_bounds = array<i64: 16, 256>}, {transform_indices = @transform_6, window_bounds = array<i64: 1, 8, 256>}]} {
    %c0 = arith.constant 0 : index
    %c0_0 = arith.constant 0 : index
    %0 = vector.load %arg2[%c0, %c0_0] : memref<8x4xf32, #tpu.memory_space<vmem>>, vector<8x4xf32>
    %c0_1 = arith.constant 0 : index
    %c0_2 = arith.constant 0 : index
    %1 = vector.load %arg3[%c0_1, %c0_2] : memref<1x256xf32, #tpu.memory_space<vmem>>, vector<1x256xf32>
    %c0_3 = arith.constant 0 : index
    %c0_4 = arith.constant 0 : index
    %2 = vector.load %arg4[%c0_3, %c0_4] : memref<1x256xf32, #tpu.memory_space<vmem>>, vector<1x256xf32>
    %c0_5 = arith.constant 0 : index
    %c0_6 = arith.constant 0 : index
    %3 = vector.load %arg5[%c0_5, %c0_6] : memref<256x16xf32, #tpu.memory_space<vmem>>, vector<256x16xf32>
    %c0_7 = arith.constant 0 : index
    %c0_8 = arith.constant 0 : index
    %4 = vector.load %arg6[%c0_7, %c0_8] : memref<16x256xf32, #tpu.memory_space<vmem>>, vector<16x256xf32>
    %c0_i32 = arith.constant 0 : i32
    %5 = arith.index_cast %c0_i32 : i32 to index
    %c0_9 = arith.constant 0 : index
    %c0_10 = arith.constant 0 : index
    %6 = vector.load %arg1[%5, %c0_9, %c0_10] : memref<1x4x256xf32, #tpu.memory_space<vmem>>, vector<1x4x256xf32>
    %7 = vector.shape_cast %6 : vector<1x4x256xf32> to vector<4x256xf32>
    %cst = arith.constant dense<0.000000e+00> : vector<8x256xf32>
    %8 = tpu.matmul %0, %7, %cst {dimension_numbers = #tpu.dot_dimension_numbers<[1], [0], [0], [1], [0, 0, 1, 1], [], []>} : vector<8x4xf32>, vector<4x256xf32>, vector<8x256xf32> -> vector<8x256xf32>
    %cst_11 = arith.constant dense<0.000000e+00> : vector<8x16xf32>
    %9 = tpu.matmul %8, %3, %cst_11 {dimension_numbers = #tpu.dot_dimension_numbers<[1], [0], [0], [1], [0, 0, 1, 1], [], []>} : vector<8x256xf32>, vector<256x16xf32>, vector<8x16xf32> -> vector<8x16xf32>
    %10 = arith.mulf %8, %8 : vector<8x256xf32>
    %cst_12 = arith.constant dense<0.000000e+00> : vector<8x16xf32>
    %11 = tpu.matmul %10, %3, %cst_12 {dimension_numbers = #tpu.dot_dimension_numbers<[1], [0], [0], [1], [0, 0, 1, 1], [], []>} : vector<8x256xf32>, vector<256x16xf32>, vector<8x16xf32> -> vector<8x16xf32>
    %12 = arith.mulf %9, %9 : vector<8x16xf32>
    %13 = arith.subf %11, %12 : vector<8x16xf32>
    %cst_13 = arith.constant 0.000000e+00 : f32
    %14 = vector.broadcast %cst_13 : f32 to vector<8x16xf32>
    %15 = arith.maximumf %13, %14 : vector<8x16xf32>
    %cst_14 = arith.constant 9.99999974E-6 : f32
    %16 = vector.broadcast %cst_14 : f32 to vector<8x16xf32>
    %17 = arith.addf %15, %16 : vector<8x16xf32>
    %18 = math.rsqrt %17 : vector<8x16xf32>
    %cst_15 = arith.constant dense<0.000000e+00> : vector<8x256xf32>
    %19 = tpu.matmul %9, %4, %cst_15 {dimension_numbers = #tpu.dot_dimension_numbers<[1], [0], [0], [1], [0, 0, 1, 1], [], []>} : vector<8x16xf32>, vector<16x256xf32>, vector<8x256xf32> -> vector<8x256xf32>
    %cst_16 = arith.constant dense<0.000000e+00> : vector<8x256xf32>
    %20 = tpu.matmul %18, %4, %cst_16 {dimension_numbers = #tpu.dot_dimension_numbers<[1], [0], [0], [1], [0, 0, 1, 1], [], []>} : vector<8x16xf32>, vector<16x256xf32>, vector<8x256xf32> -> vector<8x256xf32>
    %21 = arith.subf %8, %19 : vector<8x256xf32>
    %22 = arith.mulf %21, %20 : vector<8x256xf32>
    %23 = vector.broadcast %1 : vector<1x256xf32> to vector<8x256xf32>
    %24 = arith.mulf %22, %23 : vector<8x256xf32>
    %25 = vector.broadcast %2 : vector<1x256xf32> to vector<8x256xf32>
    %26 = arith.addf %24, %25 : vector<8x256xf32>
    %27 = arith.index_cast %c0_i32 : i32 to index
    %c0_17 = arith.constant 0 : index
    %c0_18 = arith.constant 0 : index
    %28 = vector.load %arg7[%27, %c0_17, %c0_18] : memref<1x8x256xf32, #tpu.memory_space<vmem>>, vector<1x8x256xf32>
    %29 = vector.shape_cast %28 : vector<1x8x256xf32> to vector<8x256xf32>
    %30 = vector.shape_cast %26 : vector<8x256xf32> to vector<1x8x256xf32>
    tpu.vector_store %arg7[%27, %c0_17, %c0_18], %30 {strides = array<i32>} : memref<1x8x256xf32, #tpu.memory_space<vmem>>, vector<1x8x256xf32>,
    %c1_i32 = arith.constant 1 : i32
    return
  }
  func.func @transform_0(%arg0: i32) -> (i32, i32, i32) {
    %c0_i32 = arith.constant 0 : i32
    %c0_i32_0 = arith.constant 0 : i32
    %c0_i32_1 = arith.constant 0 : i32
    return %arg0, %c0_i32, %c0_i32_0 : i32, i32, i32
  }
  func.func @transform_1(%arg0: i32) -> (i32, i32) {
    %c0_i32 = arith.constant 0 : i32
    %c0_i32_0 = arith.constant 0 : i32
    %c0_i32_1 = arith.constant 0 : i32
    return %c0_i32, %c0_i32_0 : i32, i32
  }
  func.func @transform_2(%arg0: i32) -> (i32, i32) {
    %c0_i32 = arith.constant 0 : i32
    %c0_i32_0 = arith.constant 0 : i32
    %c0_i32_1 = arith.constant 0 : i32
    return %c0_i32, %c0_i32_0 : i32, i32
  }
  func.func @transform_3(%arg0: i32) -> (i32, i32) {
    %c0_i32 = arith.constant 0 : i32
    %c0_i32_0 = arith.constant 0 : i32
    %c0_i32_1 = arith.constant 0 : i32
    return %c0_i32, %c0_i32_0 : i32, i32
  }
  func.func @transform_4(%arg0: i32) -> (i32, i32) {
    %c0_i32 = arith.constant 0 : i32
    %c0_i32_0 = arith.constant 0 : i32
    %c0_i32_1 = arith.constant 0 : i32
    return %c0_i32, %c0_i32_0 : i32, i32
  }
  func.func @transform_5(%arg0: i32) -> (i32, i32) {
    %c0_i32 = arith.constant 0 : i32
    %c0_i32_0 = arith.constant 0 : i32
    %c0_i32_1 = arith.constant 0 : i32
    return %c0_i32, %c0_i32_0 : i32, i32
  }
  func.func @transform_6(%arg0: i32) -> (i32, i32, i32) {
    %c0_i32 = arith.constant 0 : i32
    %c0_i32_0 = arith.constant 0 : i32
    %c0_i32_1 = arith.constant 0 : i32
    return %arg0, %c0_i32, %c0_i32_0 : i32, i32, i32
  }
}

</mosaic_0001>

<llo_original>
// kernel: tile.13
$region0: #{tile.13}
  #allocation0 [shape = 's32[1]{0}', space=sflag, size = 0x4, scoped, tag = 'scoped memory for tile.13']
  %s0 = inlined_call_operand.vmem [shape: f32[16], index: 0, kind: input, shape index: {}]
  %s1 = inlined_call_operand.vmem [shape: f32[16,16], index: 1, kind: output, shape index: {}]
  // Predicated region
  $region2: #{tile.13} parent=0 // pred_check
    _
  $region3: #{tile.13} parent=0 // pred_check_branch
    %3 = sbr.rel (0) target = $region5
  $region4: #{tile.13} parent=0 // pred_region
    _
  $region5: #{tile.13} parent=0 // pred_fallthru
    _
  %v4 = vld [vmem:[%s0] ss:$0 sm:$0xff]
  %5 = vst [vmem:[%s1] sm:$0xff] %v4
  %s6 = scalar_lea.vmem %s1, 8
  %7 = vst [vmem:[%s6] sm:$0xff] %v4

// kernel: tile.14
$region0: #{tile.14}
  %s0 = inlined_call_operand.vmem [shape: f32[16,16], index: 0, kind: input, shape index: {}]
  %s1 = inlined_call_operand.vmem [shape: f32[1,256], index: 1, kind: output, shape index: {}]
  $region1: #{tile.14} parent=0
    #allocation0 [shape = 'u8[8192]{0}', space=vmem, size = 0x2000, scoped, tag = 'scoped mem for output reshape']
    %s2 = smov 3
    %v3 = vld [vmem:[%s0] ss:$8 sm:%s2]
    %vm4 = vcmask 130048
    %5 = vst.msk [vmem:[#allocation0] ss:$8 sm:$0x3] %vm4, %v3
    %s6 = scalar_lea.vmem %s0, 7
    %s7 = smov 3
    %v8 = vld [vmem:[%s6] ss:$8 sm:%s7]
    %9 = vrot.lane.b32.xlu0 %v8, 112
    %v10 = vpop.permute.xlu0 %9
    %vm11 = vcmask 1048448
    %12 = vst.msk [vmem:[#allocation0] ss:$8 sm:$0x3] %vm11, %v10
    %s13 = scalar_lea.vmem %s0, 6
    %s14 = smov 3
    %v15 = vld [vmem:[%s13] ss:$8 sm:%s14]
    %16 = vrot.lane.b32.xlu0 %v15, 96
    %v17 = vpop.permute.xlu0 %16
    %vm18 = vcmask 917248
    %19 = vst.msk [vmem:[#allocation0] ss:$8 sm:$0x3] %vm18, %v17
    %s20 = scalar_lea.vmem %s0, 5
    %s21 = smov 3
    %v22 = vld [vmem:[%s20] ss:$8 sm:%s21]
    %23 = vrot.lane.b32.xlu0 %v22, 80
    %v24 = vpop.permute.xlu0 %23
    %vm25 = vcmask 786048
    %26 = vst.msk [vmem:[#allocation0] ss:$8 sm:$0x3] %vm25, %v24
    %s27 = scalar_lea.vmem %s0, 4
    %s28 = smov 3
    %v29 = vld [vmem:[%s27] ss:$8 sm:%s28]
    %30 = vrot.lane.b32.xlu0 %v29, 64
    %v31 = vpop.permute.xlu0 %30
    %vm32 = vcmask 654848
    %33 = vst.msk [vmem:[#allocation0] ss:$8 sm:$0x3] %vm32, %v31
    %s34 = scalar_lea.vmem %s0, 3
    %s35 = smov 3
    %v36 = vld [vmem:[%s34] ss:$8 sm:%s35]
    %37 = vrot.lane.b32.xlu0 %v36, 48
    %v38 = vpop.permute.xlu0 %37
    %vm39 = vcmask 523648
    %40 = vst.msk [vmem:[#allocation0] ss:$8 sm:$0x3] %vm39, %v38
    %s41 = scalar_lea.vmem %s0, 2
    %s42 = smov 3
    %v43 = vld [vmem:[%s41] ss:$8 sm:%s42]
    %44 = vrot.lane.b32.xlu0 %v43, 32
    %v45 = vpop.permute.xlu0 %44
    %vm46 = vcmask 392448
    %47 = vst.msk [vmem:[#allocation0] ss:$8 sm:$0x3] %vm46, %v45
    %s48 = scalar_lea.vmem %s0, 1
    %s49 = smov 3
    %v50 = vld [vmem:[%s48] ss:$8 sm:%s49]
    %51 = vrot.lane.b32.xlu0 %v50, 16
    %v52 = vpop.permute.xlu0 %51
    %vm53 = vcmask 261248
    %54 = vst.msk [vmem:[#allocation0] ss:$8 sm:$0x3] %vm53, %v52
    %s56 = ssub.s32 2, 1
    %v57 = vld [vmem:[#allocation0] sm:%s56]
    %s59 = ssub.s32 2, 1
    %60 = vst [vmem:[%s1] sm:%s59] %v57
    %s61 = scalar_lea.vmem [#allocation0], 8
    %v62 = vld [vmem:[%s61] sm:%s56]
    %s64 = ssub.s32 2, 1
    %s65 = scalar_lea.vmem %s1, 1
    %66 = vst [vmem:[%s65] sm:%s64] %v62

</llo_original>
